<compile_context>
chip_gen: v7x
topology: tpu7x:2x2x1
jax: 0.10.0
libtpu: 0.0.40
codegen_flags: <defaults>
</compile_context>

<pallas_src>
import jax
import jax.numpy as jnp
from jax.experimental import pallas as pl
from jax.experimental.pallas import tpu as pltpu

LN_EPS = 1e-6


def _final_layer_kernel(x_ref, shift_ref, scale1_ref, w_ref, b_ref, o_ref):
    b = pl.program_id(0)

    # --- LayerNorm statistics over hidden dim (no affine), fp32 math ---
    x32 = x_ref[0].astype(jnp.float32)                     # (tile_t, H)
    mean = jnp.mean(x32, axis=-1, keepdims=True)           # (tile_t, 1)
    xc = x32 - mean
    var = jnp.mean(xc * xc, axis=-1, keepdims=True)
    rstd = jax.lax.rsqrt(var + LN_EPS)                     # (tile_t, 1)

    # --- normalize + modulate fused, cast straight to the weight dtype ---
    shift = shift_ref[pl.ds(b, 1), :].astype(jnp.float32)      # (1, H)
    scale1 = scale1_ref[pl.ds(b, 1), :].astype(jnp.float32)    # (1, H) = 1+scale
    x_mod = (xc * rstd * scale1 + shift).astype(w_ref.dtype)   # (tile_t, H)

    # --- final linear projection, fp32 accumulation on the MXU ---
    out = jnp.dot(x_mod, w_ref[...], preferred_element_type=jnp.float32)
    out = out + b_ref[...].astype(jnp.float32)              # (tile_t, D_pad)
    o_ref[0] = out.astype(o_ref.dtype)


def _vmem_capacity_bytes():
    """Physical VMEM per core; conservative (v7x) fallback if query fails."""
    try:
        cap = pltpu.get_tpu_info().vmem_capacity_bytes
        if cap:
            return int(cap)
    except Exception:
        pass
    return 64 * 1024 * 1024


def _choose_tile_t(T, H, x_itemsize, w_itemsize, D_pad, B, vmem_cap_bytes,
                   tile_t=None, target_bytes=8 * 1024 * 1024):
    """Token tile: ~8 MiB x slab, clamped by a corrected VMEM budget."""
    if tile_t is None:
        # HBM-amortization target for the x tile.
        tile_from_target = max(16, target_bytes // max(1, H * x_itemsize))
        # VMEM budget per token row: double-buffered x + out tiles plus
        # ~3 full-size fp32 temporaries for the LN/modulate stage.
        per_row = 2 * H * x_itemsize + 2 * D_pad * x_itemsize + 3 * H * 4
        fixed = (2 * (H * D_pad * w_itemsize + D_pad * 4)   # w_lin + bias
                 + 2 * 2 * B * H * 4)                       # shift + (1+scale)
        slack = 2 * 1024 * 1024                             # Mosaic scratch
        tile_from_vmem = max(16, (vmem_cap_bytes - fixed - slack) // per_row)
        tile_t = int(min(tile_from_target, tile_from_vmem))
    if tile_t >= T:
        return T
    # multiple of 16 keeps bf16 (16,128) sublane packing clean (and >=8 f32).
    return max(16, (tile_t // 16) * 16)


def final_layer(x, c, w_ada, b_ada, w_lin, b_lin, *, tile_t=None):
    """Pallas implementation of DiT FinalLayer.forward.

    x:      (B, T, H)   tokens (fp32 or bf16; bf16 is the production path)
    c:      (B, H)      conditioning vector
    w_ada:  (H, 2H)     adaLN linear weight, (in, out) layout -- [shift | scale]
    b_ada:  (2H,)
    w_lin:  (H, D)      final linear weight, (in, out) layout, D = p*p*out_ch
    b_lin:  (D,)
    returns (B, T, D) in x.dtype
    """
    B, T, H = x.shape
    D = w_lin.shape[1]
    D_pad = ((D + 127) // 128) * 128          # lane-dense output width

    # ---- adaLN hoisted to XLA: one tiny (B,H)@(H,2H) matmul for all batches.
    c32 = c.astype(jnp.float32)
    silu = c32 * jax.nn.sigmoid(c32)
    ada = silu @ w_ada.astype(jnp.float32) + b_ada.astype(jnp.float32)  # (B,2H)
    shift = ada[:, :H]                                                  # (B, H)
    scale1 = ada[:, H:] + 1.0                                           # (B, H)

    # ---- zero-pad the final linear to a multiple of 128 output columns so
    #      the kernel's stores are unmasked lane-dense vst.
    if D_pad != D:
        w_pad = jnp.pad(w_lin, ((0, 0), (0, D_pad - D)))
        b_pad = jnp.pad(b_lin, (0, D_pad - D))
    else:
        w_pad, b_pad = w_lin, b_lin
    b_pad2d = b_pad.reshape(1, D_pad).astype(jnp.float32)

    # ---- per-generation VMEM cap and tile choice.
    vmem_cap = (_vmem_capacity_bytes() * 3) // 4
    tile_t = _choose_tile_t(T, H, x.dtype.itemsize, w_pad.dtype.itemsize,
                            D_pad, B, vmem_cap, tile_t=tile_t)
    num_t = pl.cdiv(T, tile_t)

    cost = pl.CostEstimate(
        flops=int(2 * B * T * H * D_pad),
        transcendentals=0,
        bytes_accessed=int(B * T * H * x.dtype.itemsize
                           + B * T * D_pad * x.dtype.itemsize
                           + H * D_pad * w_pad.dtype.itemsize),
    )

    out_pad = pl.pallas_call(
        _final_layer_kernel,
        out_shape=jax.ShapeDtypeStruct((B, T, D_pad), x.dtype),
        grid_spec=pltpu.PrefetchScalarGridSpec(
            num_scalar_prefetch=0,
            grid=(B, num_t),
            in_specs=[
                pl.BlockSpec((1, tile_t, H), lambda b, t: (b, t, 0)),  # x tile
                pl.BlockSpec((B, H), lambda b, t: (0, 0)),             # shift (resident)
                pl.BlockSpec((B, H), lambda b, t: (0, 0)),             # 1+scale (resident)
                pl.BlockSpec((H, D_pad), lambda b, t: (0, 0)),         # w_lin (resident)
                pl.BlockSpec((1, D_pad), lambda b, t: (0, 0)),         # b_lin (resident)
            ],
            out_specs=pl.BlockSpec((1, tile_t, D_pad), lambda b, t: (b, t, 0)),
        ),
        compiler_params=pltpu.CompilerParams(
            dimension_semantics=("parallel", "parallel"),
            vmem_limit_bytes=int(vmem_cap),
        ),
        cost_estimate=cost,
    )(x, shift, scale1, w_pad, b_pad2d)

    if D_pad != D:
        return out_pad[..., :D]
    return out_pad


def final_layer_ref(x, c, w_ada, b_ada, w_lin, b_lin):
    """Pure-JAX fp32 reference matching the PyTorch forward."""
    H = x.shape[-1]
    x32 = x.astype(jnp.float32)
    c32 = c.astype(jnp.float32)
    silu = c32 * jax.nn.sigmoid(c32)
    ada = silu @ w_ada.astype(jnp.float32) + b_ada.astype(jnp.float32)
    shift, scale = ada[:, :H], ada[:, H:]
    mean = jnp.mean(x32, axis=-1, keepdims=True)
    var = jnp.mean((x32 - mean) ** 2, axis=-1, keepdims=True)
    x_norm = (x32 - mean) / jnp.sqrt(var + LN_EPS)
    x_mod = x_norm * (1.0 + scale[:, None, :]) + shift[:, None, :]
    return x_mod @ w_lin.astype(jnp.float32) + b_lin.astype(jnp.float32)


if __name__ == "__main__":
    # Small shapes consistent with the module:
    #   hidden_size=32, patch_size=2, out_channels=4 -> D = 2*2*4 = 16
    B, T, H = 2, 8, 32
    patch_size, out_channels = 2, 4
    D = patch_size * patch_size * out_channels

    key = jax.random.PRNGKey(0)
    kx, kc, kwa, kba, kwl, kbl = jax.random.split(key, 6)

    x = jax.random.normal(kx, (B, T, H), dtype=jnp.float32)
    c = jax.random.normal(kc, (B, H), dtype=jnp.float32)
    w_ada = jax.random.normal(kwa, (H, 2 * H), dtype=jnp.float32) * 0.02
    b_ada = jax.random.normal(kba, (2 * H,), dtype=jnp.float32) * 0.02
    w_lin = jax.random.normal(kwl, (H, D), dtype=jnp.float32) * 0.02
    b_lin = jax.random.normal(kbl, (D,), dtype=jnp.float32) * 0.02

    ref = final_layer_ref(x, c, w_ada, b_ada, w_lin, b_lin)

    # 1) fp32, single token tile per batch element.
    out = jax.block_until_ready(final_layer(x, c, w_ada, b_ada, w_lin, b_lin))
    assert out.shape == (B, T, D)
    assert jnp.allclose(out, ref, atol=1e-5, rtol=1e-5), (
        f"fp32 max abs err {jnp.max(jnp.abs(out - ref))}"
    )

    # 2) fp32, multi-tile token grid (exercises the (B, T-tiles) pipeline).
    T2 = 64
    x2 = jax.random.normal(kx, (B, T2, H), dtype=jnp.float32)
    ref2 = final_layer_ref(x2, c, w_ada, b_ada, w_lin, b_lin)
    out2 = jax.block_until_ready(
        final_layer(x2, c, w_ada, b_ada, w_lin, b_lin, tile_t=16))
    assert out2.shape == (B, T2, D)
    assert jnp.allclose(out2, ref2, atol=1e-5, rtol=1e-5), (
        f"tiled max abs err {jnp.max(jnp.abs(out2 - ref2))}"
    )

    # 3) ragged last token tile (T not divisible by tile_t).
    T3 = 40
    x3 = jax.random.normal(kc, (B, T3, H), dtype=jnp.float32)
    ref3 = final_layer_ref(x3, c, w_ada, b_ada, w_lin, b_lin)
    out3 = jax.block_until_ready(
        final_layer(x3, c, w_ada, b_ada, w_lin, b_lin, tile_t=16))
    assert out3.shape == (B, T3, D)
    assert jnp.allclose(out3, ref3, atol=1e-5, rtol=1e-5), (
        f"ragged max abs err {jnp.max(jnp.abs(out3 - ref3))}"
    )

    # 4) bf16 activations/weights in HBM (production path), fp32 math inside.
    out_bf = jax.block_until_ready(
        final_layer(x.astype(jnp.bfloat16), c, w_ada, b_ada,
                    w_lin.astype(jnp.bfloat16), b_lin))
    assert out_bf.dtype == jnp.bfloat16
    assert jnp.allclose(out_bf.astype(jnp.float32), ref, atol=5e-2, rtol=5e-2), (
        f"bf16 max abs err {jnp.max(jnp.abs(out_bf.astype(jnp.float32) - ref))}"
    )

    print("KERNEL_OK")
</pallas_src>

<mosaic_0001>
module attributes {stable_mosaic.version = 11 : i64} {
  func.func @_final_layer_kernel(%arg0: i32, %arg1: i32, %arg2: memref<1x8x32xf32, #tpu.memory_space<vmem>>, %arg3: memref<2x32xf32, #tpu.memory_space<vmem>>, %arg4: memref<2x32xf32, #tpu.memory_space<vmem>>, %arg5: memref<32x128xf32, #tpu.memory_space<vmem>>, %arg6: memref<1x128xf32, #tpu.memory_space<vmem>>, %arg7: memref<1x8x128xf32, #tpu.memory_space<vmem>>) attributes {dimension_semantics = [#tpu.dimension_semantics<parallel>, #tpu.dimension_semantics<parallel>], iteration_bounds = array<i64: 2, 1>, scalar_prefetch = 0 : i64, scratch_operands = 0 : i64, tpu.core_type = #tpu.core_type<tc>, window_params = [{transform_indices = @transform_0, window_bounds = array<i64: 1, 8, 32>}, {pipeline_mode = #tpu.pipeline_mode<synchronous>, transform_indices = @transform_1, window_bounds = array<i64: 2, 32>}, {pipeline_mode = #tpu.pipeline_mode<synchronous>, transform_indices = @transform_2, window_bounds = array<i64: 2, 32>}, {pipeline_mode = #tpu.pipeline_mode<synchronous>, transform_indices = @transform_3, window_bounds = array<i64: 32, 128>}, {pipeline_mode = #tpu.pipeline_mode<synchronous>, transform_indices = @transform_4, window_bounds = array<i64: 1, 128>}, {transform_indices = @transform_5, window_bounds = array<i64: 1, 8, 128>}]} {
    %c0 = arith.constant 0 : index
    %c0_0 = arith.constant 0 : index
    %c0_1 = arith.constant 0 : index
    %0 = vector.load %arg2[%c0, %c0_0, %c0_1] : memref<1x8x32xf32, #tpu.memory_space<vmem>>, vector<1x8x32xf32>
    %1 = vector.shape_cast %0 : vector<1x8x32xf32> to vector<8x32xf32>
    %cst = arith.constant dense<0.000000e+00> : vector<8xf32>
    %2 = vector.multi_reduction <add>, %1, %cst [1] : vector<8x32xf32> to vector<8xf32>
    %3 = vector.shape_cast %2 : vector<8xf32> to vector<8x1xf32>
    %cst_2 = arith.constant 3.200000e+01 : f32
    %4 = vector.broadcast %cst_2 : f32 to vector<8x1xf32>
    %5 = arith.divf %3, %4 : vector<8x1xf32>
    %6 = vector.broadcast %5 : vector<8x1xf32> to vector<8x32xf32>
    %7 = arith.subf %1, %6 : vector<8x32xf32>
    %8 = arith.mulf %7, %7 : vector<8x32xf32>
    %cst_3 = arith.constant dense<0.000000e+00> : vector<8xf32>
    %9 = vector.multi_reduction <add>, %8, %cst_3 [1] : vector<8x32xf32> to vector<8xf32>
    %10 = vector.shape_cast %9 : vector<8xf32> to vector<8x1xf32>
    %cst_4 = arith.constant 3.200000e+01 : f32
    %11 = vector.broadcast %cst_4 : f32 to vector<8x1xf32>
    %12 = arith.divf %10, %11 : vector<8x1xf32>
    %cst_5 = arith.constant 9.99999997E-7 : f32
    %13 = vector.broadcast %cst_5 : f32 to vector<8x1xf32>
    %14 = arith.addf %12, %13 : vector<8x1xf32>
    %15 = math.rsqrt %14 : vector<8x1xf32>
    %16 = arith.index_cast %arg0 : i32 to index
    %c0_6 = arith.constant 0 : index
    %17 = vector.load %arg3[%16, %c0_6] : memref<2x32xf32, #tpu.memory_space<vmem>>, vector<1x32xf32>
    %18 = arith.index_cast %arg0 : i32 to index
    %c0_7 = arith.constant 0 : index
    %19 = vector.load %arg4[%18, %c0_7] : memref<2x32xf32, #tpu.memory_space<vmem>>, vector<1x32xf32>
    %20 = vector.broadcast %15 : vector<8x1xf32> to vector<8x32xf32>
    %21 = arith.mulf %7, %20 : vector<8x32xf32>
    %22 = vector.broadcast %19 : vector<1x32xf32> to vector<8x32xf32>
    %23 = arith.mulf %21, %22 : vector<8x32xf32>
    %24 = vector.broadcast %17 : vector<1x32xf32> to vector<8x32xf32>
    %25 = arith.addf %23, %24 : vector<8x32xf32>
    %c0_8 = arith.constant 0 : index
    %c0_9 = arith.constant 0 : index
    %26 = vector.load %arg5[%c0_8, %c0_9] : memref<32x128xf32, #tpu.memory_space<vmem>>, vector<32x128xf32>
    %cst_10 = arith.constant dense<0.000000e+00> : vector<8x128xf32>
    %27 = tpu.matmul %25, %26, %cst_10 {dimension_numbers = #tpu.dot_dimension_numbers<[1], [0], [0], [1], [0, 0, 1, 1], [], []>} : vector<8x32xf32>, vector<32x128xf32>, vector<8x128xf32> -> vector<8x128xf32>
    %c0_11 = arith.constant 0 : index
    %c0_12 = arith.constant 0 : index
    %28 = vector.load %arg6[%c0_11, %c0_12] : memref<1x128xf32, #tpu.memory_space<vmem>>, vector<1x128xf32>
    %29 = vector.broadcast %28 : vector<1x128xf32> to vector<8x128xf32>
    %30 = arith.addf %27, %29 : vector<8x128xf32>
    %c0_13 = arith.constant 0 : index
    %c0_14 = arith.constant 0 : index
    %c0_15 = arith.constant 0 : index
    %31 = vector.load %arg7[%c0_13, %c0_14, %c0_15] : memref<1x8x128xf32, #tpu.memory_space<vmem>>, vector<1x8x128xf32>
    %32 = vector.shape_cast %31 : vector<1x8x128xf32> to vector<8x128xf32>
    %33 = vector.shape_cast %30 : vector<8x128xf32> to vector<1x8x128xf32>
    tpu.vector_store %arg7[%c0_13, %c0_14, %c0_15], %33 {strides = array<i32>} : memref<1x8x128xf32, #tpu.memory_space<vmem>>, vector<1x8x128xf32>,
    return
  }
  func.func @transform_0(%arg0: i32, %arg1: i32) -> (i32, i32, i32) {
    %c0_i32 = arith.constant 0 : i32
    %c0_i32_0 = arith.constant 0 : i32
    return %arg0, %arg1, %c0_i32 : i32, i32, i32
  }
  func.func @transform_1(%arg0: i32, %arg1: i32) -> (i32, i32) {
    %c0_i32 = arith.constant 0 : i32
    %c0_i32_0 = arith.constant 0 : i32
    %c0_i32_1 = arith.constant 0 : i32
    return %c0_i32, %c0_i32_0 : i32, i32
  }
  func.func @transform_2(%arg0: i32, %arg1: i32) -> (i32, i32) {
    %c0_i32 = arith.constant 0 : i32
    %c0_i32_0 = arith.constant 0 : i32
    %c0_i32_1 = arith.constant 0 : i32
    return %c0_i32, %c0_i32_0 : i32, i32
  }
  func.func @transform_3(%arg0: i32, %arg1: i32) -> (i32, i32) {
    %c0_i32 = arith.constant 0 : i32
    %c0_i32_0 = arith.constant 0 : i32
    %c0_i32_1 = arith.constant 0 : i32
    return %c0_i32, %c0_i32_0 : i32, i32
  }
  func.func @transform_4(%arg0: i32, %arg1: i32) -> (i32, i32) {
    %c0_i32 = arith.constant 0 : i32
    %c0_i32_0 = arith.constant 0 : i32
    %c0_i32_1 = arith.constant 0 : i32
    return %c0_i32, %c0_i32_0 : i32, i32
  }
  func.func @transform_5(%arg0: i32, %arg1: i32) -> (i32, i32, i32) {
    %c0_i32 = arith.constant 0 : i32
    %c0_i32_0 = arith.constant 0 : i32
    return %arg0, %arg1, %c0_i32 : i32, i32, i32
  }
}

</mosaic_0001>

<llo_original>
// kernel: tpu_custom_call.1
$region0: #{tpu_custom_call.1}
  #allocation0 [shape = 'u32[]', space=smem, size = 0x4, offset = 0x4, fixed_abs, tag = 'smem constant byte address 0x4 - core index']
  #allocation1 [shape = 'u32[144,128]{1,0:T(1,128)}', space=vmem, size = 0x12000, scoped, tag = 'internal scratch']
  %s0 = inlined_call_operand.hbm [shape: f32[2,8,32], index: 0, kind: input, shape index: {}]
  %s1 = inlined_call_operand.vmem [shape: f32[2,32], index: 1, kind: input, shape index: {}]
  %s2 = inlined_call_operand.vmem [shape: f32[2,32], index: 2, kind: input, shape index: {}]
  %s3 = inlined_call_operand.hbm [shape: f32[32,128], index: 3, kind: input, shape index: {}]
  %s4 = inlined_call_operand.vmem [shape: f32[1,128], index: 4, kind: input, shape index: {}]
  %s5 = inlined_call_operand.hbm [shape: f32[2,8,128], index: 5, kind: output, shape index: {}]
  %s6 = sld [smem:[#allocation0]]
  $region61: #{tpu_custom_call.1} parent=0
    _
  %s8 = ssub.s32 1, %s6
  %s9 = scalar_select 0, %s8, %s6
  $region1: #{tpu_custom_call.1} parent=0
    #allocation2 [shape = 'u8[8192]{0}', space=vmem, size = 0x2000, scoped, tag = 'input window, operand 0']
    #allocation3 [shape = 's32[2]{0}', space=sflag, size = 0x8, scoped, tag = 'scoped memory for tpu_custom_call.1']
    #allocation4 [shape = 's32[2]{0}', space=sflag, size = 0x8, scoped, tag = 'scoped memory for tpu_custom_call.1']
    #allocation5 [shape = 'u8[16384]{0}', space=vmem, size = 0x4000, scoped, tag = 'input window, operand 3, single buffered']
    #allocation6 [shape = 's32[1]{0}', space=sflag, size = 0x4, scoped, tag = 'scoped memory for tpu_custom_call.1']
    #allocation7 [shape = 'u8[8192]{0}', space=vmem, size = 0x2000, scoped, tag = 'output window, operand 0']
    %10 = vsyncpa [#allocation3], 0
    %s11 = scalar_lea.sflag [#allocation3], 1
    %12 = vsyncpa %s11, 0
    %13 = vsyncpa [#allocation6], 0
    %14 = vsyncpa [#allocation4], 0
    %s15 = scalar_lea.sflag [#allocation4], 1
    %16 = vsyncpa %s15, 0
    loop: start=0, step=1, limit=4
    $region2: #{tpu_custom_call.1} parent=1 // loop_pre_header
      _
    $region3: #{tpu_custom_call.1} parent=1 // loop_header
      %s18 = sphi 0, %s22
      %p19 = scmp.ge.s32.totalorder %s18, 4
      %s25 = sphi 0, %s37
      %s26 = sphi 0, %s33
      %s27 = sphi 0, %s25
      %s28 = sphi 0, %s26
      %s29 = sphi 0, %s27
      %s30 = sphi 0, %s28
      %s42 = sphi 0, %s44
      %s45 = sphi 0, %s42
      %s46 = sphi 0, %s45
      %s62 = sphi 0, %s46
      %s66 = sphi 0, %s66
      %s68 = sphi 0, %s66
      %s69 = sphi 0, %s68
      %s83 = sphi 0, %s69
      %s87 = sphi 0, %s87
      %s89 = sphi 0, %s87
      %s90 = sphi 0, %s89
      %s104 = sphi 0, %s90
      %s108 = sphi 0, %s108
      %s110 = sphi 0, %s108
      %s111 = sphi 0, %s110
      %s125 = sphi 0, %s111
      %s129 = sphi 0, %s129
      %s131 = sphi 0, %s129
      %s132 = sphi 0, %s131
      %s146 = sphi 0, %s132
      %s154 = sphi 0, %s156
      %s157 = sphi 0, %s154
      %s158 = sphi 0, %s157
      %s174 = sphi 0, %s158
    $region4: #{tpu_custom_call.1} parent=1 // loop_header_branch
      %21 = sbr.rel (%p19) target = $region8
    $region5: #{tpu_custom_call.1} parent=1 // loop_body
      %s23 = ssub.s32 %s18, 1
      %s24 = ssub.s32 %s18, 2
      %s31 = sadd.s32 1, %s26
      %p32 = scmp.ge.s32.totalorder %s31, 1
      %s33 = scalar_select %p32, 0, %s31
      %s34 = sadd.s32 1, %s25
      %s35 = scalar_select %p32, %s34, %s25
      %p36 = scmp.ge.s32.totalorder %s35, 2
      %s37 = scalar_select %p36, 0, %s35
      %s38 = ssub.s32 %s25, %s37
      %s39 = ssub.s32 %s26, %s33
      %s40 = sor.u32 %s38, %s39
      %p41 = scmp.eq.s32.totalorder %s40, 0
      %s43 = sadd.s32 %s42, 1
      %s44 = scalar_select %p41, %s42, %s43
      %p47 = pneg %p41
      %p48 = scmp.eq.s32.totalorder %s18, 1
      %p49 = por %p47, %p48
      %p50 = scmp.ne.s32.totalorder %s42, %s45
      %p51 = scmp.eq.s32.totalorder %s18, 0
      %p52 = por %p50, %p51
      %p53 = scmp.ne.s32.totalorder %s42, %s45
      %p54 = scmp.eq.s32.totalorder %s23, 1
      %p55 = por %p53, %p54
      %p56 = scmp.ne.s32.totalorder %s45, %s46
      %p57 = scmp.eq.s32.totalorder %s23, 0
      %p58 = por %p56, %p57
      %p59 = scmp.ne.s32.totalorder %s45, %s46
      %p60 = scmp.eq.s32.totalorder %s24, 1
      %p61 = por %p59, %p60
      %p63 = scmp.ne.s32.totalorder %s46, %s62
      %p64 = scmp.eq.s32.totalorder %s24, 0
      %p65 = por %p63, %p64
      %s67 = sadd.s32 %s66, 1
      %p70 = scmp.eq.s32.totalorder %s18, 1
      %p71 = scmp.ne.s32.totalorder %s66, %s68
      %p72 = scmp.eq.s32.totalorder %s18, 0
      %p73 = por %p71, %p72
      %p74 = scmp.ne.s32.totalorder %s66, %s68
      %p75 = scmp.eq.s32.totalorder %s23, 1
      %p76 = por %p74, %p75
      %p77 = scmp.ne.s32.totalorder %s68, %s69
      %p78 = scmp.eq.s32.totalorder %s23, 0
      %p79 = por %p77, %p78
      %p80 = scmp.ne.s32.totalorder %s68, %s69
      %p81 = scmp.eq.s32.totalorder %s24, 1
      %p82 = por %p80, %p81
      %p84 = scmp.ne.s32.totalorder %s69, %s83
      %p85 = scmp.eq.s32.totalorder %s24, 0
      %p86 = por %p84, %p85
      %s88 = sadd.s32 %s87, 1
      %p91 = scmp.eq.s32.totalorder %s18, 1
      %p92 = scmp.ne.s32.totalorder %s87, %s89
      %p93 = scmp.eq.s32.totalorder %s18, 0
      %p94 = por %p92, %p93
      %p95 = scmp.ne.s32.totalorder %s87, %s89
      %p96 = scmp.eq.s32.totalorder %s23, 1
      %p97 = por %p95, %p96
      %p98 = scmp.ne.s32.totalorder %s89, %s90
      %p99 = scmp.eq.s32.totalorder %s23, 0
      %p100 = por %p98, %p99
      %p101 = scmp.ne.s32.totalorder %s89, %s90
      %p102 = scmp.eq.s32.totalorder %s24, 1
      %p103 = por %p101, %p102
      %p105 = scmp.ne.s32.totalorder %s90, %s104
      %p106 = scmp.eq.s32.totalorder %s24, 0
      %p107 = por %p105, %p106
      %s109 = sadd.s32 %s108, 1
      %p112 = scmp.eq.s32.totalorder %s18, 1
      %p113 = scmp.ne.s32.totalorder %s108, %s110
      %p114 = scmp.eq.s32.totalorder %s18, 0
      %p115 = por %p113, %p114
      %p116 = scmp.ne.s32.totalorder %s108, %s110
      %p117 = scmp.eq.s32.totalorder %s23, 1
      %p118 = por %p116, %p117
      %p119 = scmp.ne.s32.totalorder %s110, %s111
      %p120 = scmp.eq.s32.totalorder %s23, 0
      %p121 = por %p119, %p120
      %p122 = scmp.ne.s32.totalorder %s110, %s111
      %p123 = scmp.eq.s32.totalorder %s24, 1
      %p124 = por %p122, %p123
      %p126 = scmp.ne.s32.totalorder %s111, %s125
      %p127 = scmp.eq.s32.totalorder %s24, 0
      %p128 = por %p126, %p127
      %s130 = sadd.s32 %s129, 1
      %p133 = scmp.eq.s32.totalorder %s18, 1
      %p134 = scmp.ne.s32.totalorder %s129, %s131
      %p135 = scmp.eq.s32.totalorder %s18, 0
      %p136 = por %p134, %p135
      %p137 = scmp.ne.s32.totalorder %s129, %s131
      %p138 = scmp.eq.s32.totalorder %s23, 1
      %p139 = por %p137, %p138
      %p140 = scmp.ne.s32.totalorder %s131, %s132
      %p141 = scmp.eq.s32.totalorder %s23, 0
      %p142 = por %p140, %p141
      %p143 = scmp.ne.s32.totalorder %s131, %s132
      %p144 = scmp.eq.s32.totalorder %s24, 1
      %p145 = por %p143, %p144
      %p147 = scmp.ne.s32.totalorder %s132, %s146
      %p148 = scmp.eq.s32.totalorder %s24, 0
      %p149 = por %p147, %p148
      %s150 = ssub.s32 %s25, %s37
      %s151 = ssub.s32 %s26, %s33
      %s152 = sor.u32 %s150, %s151
      %p153 = scmp.eq.s32.totalorder %s152, 0
      %s155 = sadd.s32 %s154, 1
      %s156 = scalar_select %p153, %s154, %s155
      %p159 = pneg %p153
      %p160 = scmp.eq.s32.totalorder %s18, 1
      %p161 = por %p159, %p160
      %p162 = scmp.ne.s32.totalorder %s154, %s157
      %p163 = scmp.eq.s32.totalorder %s18, 0
      %p164 = por %p162, %p163
      %p165 = scmp.ne.s32.totalorder %s154, %s157
      %p166 = scmp.eq.s32.totalorder %s23, 1
      %p167 = por %p165, %p166
      %p168 = scmp.ne.s32.totalorder %s157, %s158
      %p169 = scmp.eq.s32.totalorder %s23, 0
      %p170 = por %p168, %p169
      %p171 = scmp.ne.s32.totalorder %s157, %s158
      %p172 = scmp.eq.s32.totalorder %s24, 1
      %p173 = por %p171, %p172
      %p175 = scmp.ne.s32.totalorder %s158, %s174
      %p176 = scmp.eq.s32.totalorder %s24, 0
      %p177 = por %p175, %p176
      %p178 = scmp.le.s32.totalorder 1, %s18
      %p179 = scmp.lt.s32.totalorder %s18, 3
      %p180 = pnand %p178, %p179
      %p181 = pneg %p180
      // Predicated region
      $region9: #{tpu_custom_call.1} parent=5 // pred_check
        _
      $region10: #{tpu_custom_call.1} parent=5 // pred_check_branch
        %183 = sbr.rel (%p180) target = $region12
      $region11: #{tpu_custom_call.1} parent=5 // pred_region
        %s184 = ssub.s32 %s18, 1
        // Predicated region
        $region13: #{tpu_custom_call.1} parent=11 // pred_check
          %p185 = pneg %p79
        $region14: #{tpu_custom_call.1} parent=11 // pred_check_branch
          %187 = sbr.rel (%p185) target = $region16
        $region15: #{tpu_custom_call.1} parent=11 // pred_region
          _
        $region16: #{tpu_custom_call.1} parent=11 // pred_fallthru
          _
        // Predicated region
        $region17: #{tpu_custom_call.1} parent=11 // pred_check
          %p188 = pneg %p100
        $region18: #{tpu_custom_call.1} parent=11 // pred_check_branch
          %190 = sbr.rel (%p188) target = $region20
        $region19: #{tpu_custom_call.1} parent=11 // pred_region
          _
        $region20: #{tpu_custom_call.1} parent=11 // pred_fallthru
          _
        // Predicated region
        $region21: #{tpu_custom_call.1} parent=11 // pred_check
          %p191 = pneg %p121
        $region22: #{tpu_custom_call.1} parent=11 // pred_check_branch
          %193 = sbr.rel (%p191) target = $region24
        $region23: #{tpu_custom_call.1} parent=11 // pred_region
          %s195 = ssub.s32 512, 512
          %196 = vsyncadd [#allocation6], %s195
          %s197 = sshll.u32 [#allocation5], 4
          %s198 = int_to_ptr.vmem [resolvable:$true] %s197
          %203 = dma.hbm_to_vmem [thread:$0]  %s3, 512, %s198, [#allocation6], 128, 128, 8
        $region24: #{tpu_custom_call.1} parent=11 // pred_fallthru
          _
        // Predicated region
        $region25: #{tpu_custom_call.1} parent=11 // pred_check
          %p204 = pneg %p142
        $region26: #{tpu_custom_call.1} parent=11 // pred_check_branch
          %206 = sbr.rel (%p204) target = $region28
        $region27: #{tpu_custom_call.1} parent=11 // pred_region
          _
        $region28: #{tpu_custom_call.1} parent=11 // pred_fallthru
          _
      $region12: #{tpu_custom_call.1} parent=5 // pred_fallthru
        _
      %p207 = scmp.lt.s32.totalorder %s18, 2
      // Predicated region
      $region29: #{tpu_custom_call.1} parent=5 // pred_check
        %p208 = pneg %p207
      $region30: #{tpu_custom_call.1} parent=5 // pred_check_branch
        %210 = sbr.rel (%p208) target = $region32
      $region31: #{tpu_custom_call.1} parent=5 // pred_region
        // Predicated region
        $region33: #{tpu_custom_call.1} parent=31 // pred_check
          %p211 = pneg %p52
        $region34: #{tpu_custom_call.1} parent=31 // pred_check_branch
          %213 = sbr.rel (%p211) target = $region36
        $region35: #{tpu_custom_call.1} parent=31 // pred_region
          %s214 = sand.u32 %s42, 1
          %s215 = scalar_lea.sflag [#allocation3], %s214
          %s216 = sand.u32 %s42, 1
          %s217 = smul.addr %s216, 8
          %s218 = scalar_lea.vmem [#allocation2], %s217
          %s220 = ssub.s32 128, 128
          %221 = vsyncadd %s215, %s220
          %s222 = sadd.s32 %s26, %s25
          %s223 = smul.addr %s222, 128
          %s224 = scalar_lea.hbm %s0, %s223
          %s226 = sshll.u32 %s218, 4
          %s227 = int_to_ptr.vmem [resolvable:$true] %s226
          %229 = dma.hbm_to_vmem [thread:$0]  %s224, 128, %s227, %s215
        $region36: #{tpu_custom_call.1} parent=31 // pred_fallthru
          _
      $region32: #{tpu_custom_call.1} parent=5 // pred_fallthru
        _
      %p230 = scmp.le.s32.totalorder 1, %s18
      %p231 = scmp.lt.s32.totalorder %s18, 3
      %p232 = pnand %p230, %p231
      %p233 = pneg %p232
      // Predicated region
      $region37: #{tpu_custom_call.1} parent=5 // pred_check
        _
      $region38: #{tpu_custom_call.1} parent=5 // pred_check_branch
        %235 = sbr.rel (%p232) target = $region40
      $region39: #{tpu_custom_call.1} parent=5 // pred_region
        %s236 = ssub.s32 %s18, 1
        %s237 = sand.u32 %s45, 1
        %s238 = scalar_lea.sflag [#allocation3], %s237
        %s239 = sand.u32 %s45, 1
        %s240 = smul.addr %s239, 8
        %s241 = scalar_lea.vmem [#allocation2], %s240
        // Predicated region
        $region41: #{tpu_custom_call.1} parent=39 // pred_check
          %p242 = pneg %p58
        $region42: #{tpu_custom_call.1} parent=39 // pred_check_branch
          %244 = sbr.rel (%p242) target = $region44
        $region43: #{tpu_custom_call.1} parent=39 // pred_region
          %245 = dma.done %s238, 128
        $region44: #{tpu_custom_call.1} parent=39 // pred_fallthru
          _
        // Predicated region
        $region45: #{tpu_custom_call.1} parent=39 // pred_check
          %p246 = pneg %p121
        $region46: #{tpu_custom_call.1} parent=39 // pred_check_branch
          %248 = sbr.rel (%p246) target = $region48
        $region47: #{tpu_custom_call.1} parent=39 // pred_region
          %249 = dma.done [#allocation6], 512
        $region48: #{tpu_custom_call.1} parent=39 // pred_fallthru
          _
        %s250 = sand.u32 %s45, 1
        %s251 = scalar_lea.sflag [#allocation3], %s250
        %s252 = sand.u32 %s45, 1
        %s253 = smul.addr %s252, 8
        %s254 = scalar_lea.vmem [#allocation2], %s253
        %p255 = pneg %p58
        %p256 = pneg %p55
        %p257 = pneg %p79
        %p258 = pneg %p76
        %p259 = pneg %p100
        %p260 = pneg %p97
        %p261 = pneg %p121
        %p262 = pneg %p118
        %p263 = pneg %p142
        %p264 = pneg %p139
        %p265 = pneg %p170
        %p266 = pneg %p167
        %s267 = sand.u32 %s157, 1
        %s268 = scalar_lea.sflag [#allocation4], %s267
        %s269 = sand.u32 %s157, 1
        %s270 = smul.addr %s269, 8
        %s271 = scalar_lea.vmem [#allocation7], %s270
        %v272 = vld [vmem:[%s241] sm:$0xff]
        %vm273 = vcmask 261120
        %v274 = vsel %vm273, %v272, 0.0
        %275 = vadd.xlane.f32.xlu0 %v274
        %v276 = vpop.xlane.xlu0 %275
        %v277 = vrcp.pop 32.0
        %v278 = vmul.f32 %v276, %v277
        %v279 = vsub.f32 %v272, %v278
        %v280 = vmul.f32 %v279, %v279
        %v281 = vsel %vm273, %v280, 0.0
        %282 = vadd.xlane.f32.xlu0 %v281
        %v283 = vpop.xlane.xlu0 %282
        %v284 = vmul.f32 %v283, %v277
        %v285 = vadd.f32 %v284, 1e-06
        %v286 = vrsqrt.pop %v285
        %s287 = scalar_lea.vmem %s1, %s27
        %v288 = vld [vmem:[%s287] sm:$0x1]
        %s289 = scalar_lea.vmem %s2, %s27
        %v290 = vld [vmem:[%s289] sm:$0x1]
        %v291 = vmul.f32 %v279, %v286
        %v292 = vlaneseq
        %v293 = vshrl.u32 %v292, 7
        %v294 = vsub.s32 0, %v293
        %v295 = vrot.slane %v290, %v294
        %v296 = vmul.f32 %v291, %v295
        %v297 = vlaneseq
        %v298 = vshrl.u32 %v297, 7
        %v299 = vsub.s32 0, %v298
        %v300 = vrot.slane %v288, %v299
        %v301 = vadd.f32 %v296, %v300
        %v302 = vld [vmem:[#allocation5] sm:$0xff]
        %v303 = vld [vmem:[#allocation5 + $0x8] sm:$0xff]
        %v304 = vld [vmem:[#allocation5 + $0x10] sm:$0xff]
        %v305 = vld [vmem:[#allocation5 + $0x18] sm:$0xff]
        %v306 = vld [vmem:[%s4] sm:$0x1]
        %v308 = vlaneseq
        %v309 = vshrl.u32 %v308, 7
        %v310 = vsub.s32 0, %v309
        %v311 = vrot.slane %v306, %v310
        %v314 = vsel %vm273, %v301, 0
        %316 = vmatprep.subr.mxu0 0.0
        %317 = vmatpush1.msra.mxu0 %v302
        %318 = vmatprep.subr.mxu0 0.0
        %319 = vmatpush1.msra.mxu0 %v303
        %320 = vmatprep.subr.mxu0 0.0
        %321 = vmatpush1.msra.mxu0 %v304
        %322 = vmatprep.subr.mxu0 0.0
        %323 = vmatpush1.msra.mxu0 %v305
        %324 = vmatprep.subr.mxu0 0.0
        %325 = vmatpush1.msra.mxu0 0.0
        %326 = vmatprep.subr.mxu0 0.0
        %327 = vmatpush1.msra.mxu0 0.0
        %328 = vmatprep.subr.mxu0 0.0
        %329 = vmatpush1.msra.mxu0 0.0
        %330 = vmatprep.subr.mxu0 0.0
        %331 = vmatpush1.msra.mxu0 0.0
        %332 = vmatprep.subr.mxu0 0.0
        %333 = vmatpush1.msra.mxu0 0.0
        %334 = vmatprep.subr.mxu0 0.0
        %335 = vmatpush1.msra.mxu0 0.0
        %336 = vmatprep.subr.mxu0 0.0
        %337 = vmatpush1.msra.mxu0 0.0
        %338 = vmatprep.subr.mxu0 0.0
        %339 = vmatpush1.msra.mxu0 0.0
        %340 = vmatprep.subr.mxu0 0.0
        %341 = vmatpush1.msra.mxu0 0.0
        %342 = vmatprep.subr.mxu0 0.0
        %343 = vmatpush1.msra.mxu0 0.0
        %344 = vmatprep.subr.mxu0 0.0
        %345 = vmatpush1.msra.mxu0 0.0
        %346 = vmatprep.subr.mxu0 0.0
        %347 = vmatpush1.msra.mxu0 0.0
        %348 = vmatprep.subr.mxu0 0.0
        %349 = vmatpush1.msra.mxu0 0.0
        %350 = vmatprep.subr.mxu0 0.0
        %351 = vmatpush1.msra.mxu0 0.0
        %352 = vmatprep.subr.mxu0 0.0
        %353 = vmatpush1.msra.mxu0 0.0
        %354 = vmatprep.subr.mxu0 0.0
        %355 = vmatpush1.msra.mxu0 0.0
        %356 = vmatprep.subr.mxu0 0.0
        %357 = vmatpush1.msra.mxu0 0.0
        %358 = vmatprep.subr.mxu0 0.0
        %359 = vmatpush1.msra.mxu0 0.0
        %360 = vmatprep.subr.mxu0 0.0
        %361 = vmatpush1.msra.mxu0 0.0
        %362 = vmatprep.subr.mxu0 0.0
        %363 = vmatpush1.msra.mxu0 0.0
        %364 = vmatprep.subr.mxu0 0.0
        %365 = vmatpush1.msra.mxu0 0.0
        %366 = vmatprep.subr.mxu0 0.0
        %367 = vmatpush1.msra.mxu0 0.0
        %368 = vmatprep.subr.mxu0 0.0
        %369 = vmatpush1.msra.mxu0 0.0
        %370 = vmatprep.subr.mxu0 0.0
        %371 = vmatpush1.msra.mxu0 0.0
        %372 = vmatprep.subr.mxu0 0.0
        %373 = vmatpush1.msra.mxu0 0.0
        %374 = vmatprep.subr.mxu0 0.0
        %375 = vmatpush1.msra.mxu0 0.0
        %376 = vmatprep.subr.mxu0 0.0
        %377 = vmatpush1.msra.mxu0 0.0
        %378 = vmatprep.subr.mxu0 0.0
        %379 = vmatpush1.msra.mxu0 0.0
        %380 = vmatprep.mubr.f32.mxu0 0.0
        %381 = vmatmul.mubr.f32.gmra.mrb[0].mxu0 %v314
        %v382 = vpop.f32.mrb[0].mxu0
        %v383 = vadd.f32 %v311, %v382
        %v384 = vpop.f32.mrb[0].mxu0
        %385 = vdwg.mxu0
        %386 = vst [vmem:[%s271] sm:$0xff] %v383
        %s387 = sand.u32 %s157, 1
        %s388 = scalar_lea.sflag [#allocation4], %s387
        %s389 = sand.u32 %s157, 1
        %s390 = smul.addr %s389, 8
        %s391 = scalar_lea.vmem [#allocation7], %s390
        // Predicated region
        $region49: #{tpu_custom_call.1} parent=39 // pred_check
          %p392 = pneg %p167
        $region50: #{tpu_custom_call.1} parent=39 // pred_check_branch
          %394 = sbr.rel (%p392) target = $region52
        $region51: #{tpu_custom_call.1} parent=39 // pred_region
          %s396 = ssub.s32 128, 128
          %397 = vsyncadd %s388, %s396
          %s398 = sadd.s32 %s28, %s27
          %s399 = smul.addr %s398, 128
          %s400 = scalar_lea.hbm %s5, %s399
          %s402 = sshll.u32 %s391, 4
          %s403 = int_to_ptr.vmem [resolvable:$true] %s402
          %405 = dma.vmem_to_hbm [thread:$0]  %s403, 128, %s400, %s388
        $region52: #{tpu_custom_call.1} parent=39 // pred_fallthru
          _
      $region40: #{tpu_custom_call.1} parent=5 // pred_fallthru
        _
      %p406 = scmp.le.s32.totalorder 2, %s18
      // Predicated region
      $region53: #{tpu_custom_call.1} parent=5 // pred_check
        %p407 = pneg %p406
      $region54: #{tpu_custom_call.1} parent=5 // pred_check_branch
        %409 = sbr.rel (%p407) target = $region56
      $region55: #{tpu_custom_call.1} parent=5 // pred_region
        %s410 = ssub.s32 %s18, 2
        // Predicated region
        $region57: #{tpu_custom_call.1} parent=55 // pred_check
          %p411 = pneg %p173
        $region58: #{tpu_custom_call.1} parent=55 // pred_check_branch
          %413 = sbr.rel (%p411) target = $region60
        $region59: #{tpu_custom_call.1} parent=55 // pred_region
          %s414 = sand.u32 %s158, 1
          %s415 = scalar_lea.sflag [#allocation4], %s414
          %s416 = sand.u32 %s158, 1
          %s417 = smul.addr %s416, 8
          %s418 = scalar_lea.vmem [#allocation7], %s417
          %419 = dma.done %s415, 128
        $region60: #{tpu_custom_call.1} parent=55 // pred_fallthru
          _
      $region56: #{tpu_custom_call.1} parent=5 // pred_fallthru
        _
    $region6: #{tpu_custom_call.1} parent=1 // loop_footer
      %s22 = sadd.s32 1, %s18
    $region7: #{tpu_custom_call.1} parent=1 // loop_footer_branch
      %17 = sbr.rel target = $region3
    $region8: #{tpu_custom_call.1} parent=1 // loop_exit
      _
    %420 = vsyncpa [#allocation3], 1
    %s421 = scalar_lea.sflag [#allocation3], 1
    %422 = vsyncpa %s421, 1
    %423 = vsyncpa [#allocation6], 1
    %424 = vsyncpa [#allocation4], 1
    %s425 = scalar_lea.sflag [#allocation4], 1
    %426 = vsyncpa %s425, 1

</llo_original>
